<compile_context>
chip_gen: v7x
topology: tpu7x:2x2x1
jax: 0.10.0
libtpu: 0.0.40
codegen_flags: <defaults>
</compile_context>

<pallas_src>
import functools

import jax
import jax.numpy as jnp
from jax.experimental import pallas as pl
from jax.experimental.pallas import tpu as pltpu

NEG_SLOPE = 0.01          # nn.LeakyReLU default
SUBLANE = 8

IN_F, H1_F, H2_F, OUT_F = 7, 64, 128, 6
OUT_PAD = 8               # last layer zero-padded 6 -> 8 output lanes
MAX_TILE_ROWS = 1024      # batch tile; ~4-5 MiB VMEM -> safe on v5e/v6e/v7x


def _leaky_relu(x):
    return jnp.where(x > 0, x, NEG_SLOPE * x)


def _mlp_partial_kernel(x_ref, f_ref, w1_ref, b1_ref, w2_ref, b2_ref,
                        w3_ref, b3_ref, o_ref, of_ref, *, batch, tile_rows):
    """One batch tile: 3 MXU matmuls + LeakyReLU, then per-tile partial sums.

    o_ref  (8, OUT_PAD): every row holds the same partial row with
        lanes 0..5 = sum over valid rows of pred columns,
        lane 6     = sum over valid rows of (pred - force)^2,
        lane 7     = 0.
    of_ref (8, OUT_F): every row = sum over valid rows of force columns.
    Rows >= batch (ragged last tile / sublane padding) are masked out.
    """
    x = x_ref[...].astype(jnp.bfloat16)                                   # (TB, 7)
    h1 = jnp.dot(x, w1_ref[...], preferred_element_type=jnp.float32) + b1_ref[...]
    h1 = _leaky_relu(h1).astype(jnp.bfloat16)                             # (TB, 64)
    h2 = jnp.dot(h1, w2_ref[...], preferred_element_type=jnp.float32) + b2_ref[...]
    h2 = _leaky_relu(h2).astype(jnp.bfloat16)                             # (TB, 128)
    pred = jnp.dot(h2, w3_ref[...], preferred_element_type=jnp.float32) + b3_ref[...]
    # pred: (TB, OUT_PAD); lanes OUT_F..OUT_PAD-1 are exactly 0 (zero padding).

    rows = pl.program_id(0) * tile_rows + jax.lax.broadcasted_iota(
        jnp.int32, (tile_rows, 1), 0)
    valid = rows < batch                                                  # (TB, 1)

    f = f_ref[...]                                                        # (TB, 6)
    pred_m = jnp.where(valid, pred, 0.0)                                  # (TB, 8)
    err = jnp.where(valid, pred[:, :OUT_F] - f, 0.0)                      # (TB, 6)
    f_m = jnp.where(valid, f, 0.0)                                        # (TB, 6)

    col_sum = jnp.sum(pred_m, axis=0, keepdims=True)                      # (1, 8)
    sq_sum = jnp.sum(err * err, axis=1, keepdims=True)                    # (TB, 1)
    sq_sum = jnp.sum(sq_sum, axis=0, keepdims=True)                       # (1, 1)
    f_sum = jnp.sum(f_m, axis=0, keepdims=True)                           # (1, 6)

    lane = jax.lax.broadcasted_iota(jnp.int32, (1, OUT_PAD), 1)
    part_row = col_sum + jnp.where(lane == OUT_F, sq_sum, 0.0)            # (1, 8)
    o_ref[...] = jnp.broadcast_to(part_row, (SUBLANE, OUT_PAD))
    of_ref[...] = jnp.broadcast_to(f_sum, (SUBLANE, OUT_F))


def prepare_params(params):
    """Hoisted once-per-model weight prep (not re-done every forward):
    bf16 matmul weights, f32 row-vector biases, last layer padded 6 -> 8."""
    w1, b1, w2, b2, w3, b3 = params
    w3p = jnp.pad(w3.astype(jnp.float32), ((0, 0), (0, OUT_PAD - OUT_F)))
    b3p = jnp.pad(b3.astype(jnp.float32), (0, OUT_PAD - OUT_F))
    return (w1.astype(jnp.bfloat16),
            b1.astype(jnp.float32).reshape(1, H1_F),
            w2.astype(jnp.bfloat16),
            b2.astype(jnp.float32).reshape(1, H2_F),
            w3p.astype(jnp.bfloat16),
            b3p.reshape(1, OUT_PAD))


@jax.jit
def compensation_net_forward(eef_pos_quat, eef_ex_force, prepared_params):
    """2-D (batch) branch of CompensationNet.forward.

    Returns (eef_ex_force.mean(0), pred.mean(0), mse_loss)."""
    w1, b1, w2, b2, w3p, b3p = prepared_params
    x = eef_pos_quat.astype(jnp.float32)
    force = eef_ex_force.astype(jnp.float32)
    batch = x.shape[0]

    # Pad the batch only up to a multiple of 8 sublanes (<= 7 rows; no-op for
    # aligned batches).  Padded rows are masked out inside the kernel.
    bp = ((batch + SUBLANE - 1) // SUBLANE) * SUBLANE
    if bp != batch:
        x = jnp.pad(x, ((0, bp - batch), (0, 0)))
        force = jnp.pad(force, ((0, bp - batch), (0, 0)))

    tb = min(MAX_TILE_ROWS, bp)
    num_tiles = (bp + tb - 1) // tb

    kernel = functools.partial(_mlp_partial_kernel, batch=batch, tile_rows=tb)

    parts, parts_f = pl.pallas_call(
        kernel,
        out_shape=(
            jax.ShapeDtypeStruct((num_tiles * SUBLANE, OUT_PAD), jnp.float32),
            jax.ShapeDtypeStruct((num_tiles * SUBLANE, OUT_F), jnp.float32),
        ),
        grid=(num_tiles,),
        in_specs=[
            pl.BlockSpec((tb, IN_F), lambda i: (i, 0)),        # x      (streamed)
            pl.BlockSpec((tb, OUT_F), lambda i: (i, 0)),       # force  (streamed)
            pl.BlockSpec((IN_F, H1_F), lambda i: (0, 0)),      # w1     (resident)
            pl.BlockSpec((1, H1_F), lambda i: (0, 0)),         # b1
            pl.BlockSpec((H1_F, H2_F), lambda i: (0, 0)),      # w2
            pl.BlockSpec((1, H2_F), lambda i: (0, 0)),         # b2
            pl.BlockSpec((H2_F, OUT_PAD), lambda i: (0, 0)),   # w3 (padded)
            pl.BlockSpec((1, OUT_PAD), lambda i: (0, 0)),      # b3 (padded)
        ],
        out_specs=[
            pl.BlockSpec((SUBLANE, OUT_PAD), lambda i: (i, 0)),
            pl.BlockSpec((SUBLANE, OUT_F), lambda i: (i, 0)),
        ],
        compiler_params=pltpu.CompilerParams(
            dimension_semantics=("parallel",)),
    )(x, force, w1, b1, w2, b2, w3p, b3p)

    parts = parts.reshape(num_tiles, SUBLANE, OUT_PAD)[:, 0, :]     # (tiles, 8)
    parts_f = parts_f.reshape(num_tiles, SUBLANE, OUT_F)[:, 0, :]   # (tiles, 6)
    pred_mean = jnp.sum(parts[:, :OUT_F], axis=0) / batch
    loss = jnp.sum(parts[:, OUT_F]) / (batch * OUT_F)
    force_mean = jnp.sum(parts_f, axis=0) / batch
    return force_mean, pred_mean, loss


def compensation_net_predict(eef_pos_quat_1d, prepared_params):
    """1-D branch of CompensationNet.forward (single-sample prediction)."""
    x = eef_pos_quat_1d.reshape(1, IN_F)
    dummy_force = jnp.zeros((1, OUT_F), jnp.float32)
    _, pred_mean, _ = compensation_net_forward(x, dummy_force, prepared_params)
    return pred_mean   # mean over a single row == pred[0]


def init_params(key):
    """Deterministic init mirroring nn.Linear default (U(-1/sqrt(fan_in), +))."""
    ks = jax.random.split(key, 6)

    def linear(kw, kb, fan_in, fan_out):
        bound = 1.0 / jnp.sqrt(jnp.float32(fan_in))
        w = jax.random.uniform(kw, (fan_in, fan_out), jnp.float32, -bound, bound)
        b = jax.random.uniform(kb, (fan_out,), jnp.float32, -bound, bound)
        return w, b

    w1, b1 = linear(ks[0], ks[1], IN_F, H1_F)
    w2, b2 = linear(ks[2], ks[3], H1_F, H2_F)
    w3, b3 = linear(ks[4], ks[5], H2_F, OUT_F)
    return (w1, b1, w2, b2, w3, b3)


def _reference_pred(x, params, dot_dtype):
    """Pure-JAX MLP. dot_dtype=f32 mirrors the PyTorch module exactly;
    dot_dtype=bf16 mirrors the kernel's MXU input precision (f32 accumulate)."""
    w1, b1, w2, b2, w3, b3 = params
    c = lambda a: a.astype(dot_dtype)
    h = _leaky_relu(jnp.dot(c(x), c(w1), preferred_element_type=jnp.float32) + b1)
    h = _leaky_relu(jnp.dot(c(h), c(w2), preferred_element_type=jnp.float32) + b2)
    return jnp.dot(c(h), c(w3), preferred_element_type=jnp.float32) + b3


if __name__ == "__main__":
    key = jax.random.PRNGKey(0)
    k_p, k_x, k_f = jax.random.split(key, 3)

    params = init_params(k_p)
    prepped = prepare_params(params)

    batch = 64
    eef_pos_quat = jax.random.normal(k_x, (batch, IN_F), jnp.float32)
    eef_ex_force = jax.random.normal(k_f, (batch, OUT_F), jnp.float32)

    force_mean, pred_mean, loss = compensation_net_forward(
        eef_pos_quat, eef_ex_force, prepped)
    jax.block_until_ready((force_mean, pred_mean, loss))

    # (a) precision-matched reference (bf16 matmul inputs, f32 accumulation).
    pred_bf16 = _reference_pred(eef_pos_quat, params, jnp.bfloat16)
    assert jnp.allclose(pred_mean, pred_bf16.mean(0), rtol=1e-3, atol=1e-3)
    assert jnp.allclose(loss, jnp.mean((pred_bf16 - eef_ex_force) ** 2),
                        rtol=1e-3, atol=1e-3)

    # (b) full-f32 PyTorch-equivalent reference (looser: kernel dots use bf16).
    pred_f32 = _reference_pred(eef_pos_quat, params, jnp.float32)
    assert jnp.allclose(pred_mean, pred_f32.mean(0), rtol=5e-2, atol=5e-2)
    assert jnp.allclose(loss, jnp.mean((pred_f32 - eef_ex_force) ** 2),
                        rtol=5e-2, atol=5e-2)
    assert jnp.allclose(force_mean, eef_ex_force.mean(0), rtol=1e-5, atol=1e-5)

    # (c) single-sample (1-D) branch: B=1 padded to 8 rows, masked in-kernel.
    single = compensation_net_predict(eef_pos_quat[0], prepped)
    jax.block_until_ready(single)
    assert jnp.allclose(single, pred_bf16[0], rtol=1e-3, atol=1e-3)

    print("KERNEL_OK")
</pallas_src>

<mosaic_0001>
module attributes {stable_mosaic.version = 11 : i64} {
  func.func @_mlp_partial_kernel(%arg0: i32, %arg1: memref<64x7xf32, #tpu.memory_space<vmem>>, %arg2: memref<64x6xf32, #tpu.memory_space<vmem>>, %arg3: memref<7x64xbf16, #tpu.memory_space<vmem>>, %arg4: memref<1x64xf32, #tpu.memory_space<vmem>>, %arg5: memref<64x128xbf16, #tpu.memory_space<vmem>>, %arg6: memref<1x128xf32, #tpu.memory_space<vmem>>, %arg7: memref<128x8xbf16, #tpu.memory_space<vmem>>, %arg8: memref<1x8xf32, #tpu.memory_space<vmem>>, %arg9: memref<8x8xf32, #tpu.memory_space<vmem>>, %arg10: memref<8x6xf32, #tpu.memory_space<vmem>>) attributes {dimension_semantics = [#tpu.dimension_semantics<parallel>], iteration_bounds = array<i64: 1>, scalar_prefetch = 0 : i64, scratch_operands = 0 : i64, tpu.core_type = #tpu.core_type<tc>, window_params = [{transform_indices = @transform_0, window_bounds = array<i64: 64, 7>}, {transform_indices = @transform_1, window_bounds = array<i64: 64, 6>}, {pipeline_mode = #tpu.pipeline_mode<synchronous>, transform_indices = @transform_2, window_bounds = array<i64: 7, 64>}, {pipeline_mode = #tpu.pipeline_mode<synchronous>, transform_indices = @transform_3, window_bounds = array<i64: 1, 64>}, {pipeline_mode = #tpu.pipeline_mode<synchronous>, transform_indices = @transform_4, window_bounds = array<i64: 64, 128>}, {pipeline_mode = #tpu.pipeline_mode<synchronous>, transform_indices = @transform_5, window_bounds = array<i64: 1, 128>}, {pipeline_mode = #tpu.pipeline_mode<synchronous>, transform_indices = @transform_6, window_bounds = array<i64: 128, 8>}, {pipeline_mode = #tpu.pipeline_mode<synchronous>, transform_indices = @transform_7, window_bounds = array<i64: 1, 8>}, {transform_indices = @transform_8, window_bounds = array<i64: 8, 8>}, {transform_indices = @transform_9, window_bounds = array<i64: 8, 6>}]} {
    %c0 = arith.constant 0 : index
    %c0_0 = arith.constant 0 : index
    %0 = vector.load %arg1[%c0, %c0_0] : memref<64x7xf32, #tpu.memory_space<vmem>>, vector<64x7xf32>
    %1 = arith.truncf %0 : vector<64x7xf32> to vector<64x7xbf16>
    %c0_1 = arith.constant 0 : index
    %c0_2 = arith.constant 0 : index
    %2 = vector.load %arg3[%c0_1, %c0_2] : memref<7x64xbf16, #tpu.memory_space<vmem>>, vector<7x64xbf16>
    %cst = arith.constant dense<0.000000e+00> : vector<64x64xf32>
    %3 = tpu.matmul %1, %2, %cst {dimension_numbers = #tpu.dot_dimension_numbers<[1], [0], [0], [1], [0, 0, 1, 1], [], []>} : vector<64x7xbf16>, vector<7x64xbf16>, vector<64x64xf32> -> vector<64x64xf32>
    %c0_3 = arith.constant 0 : index
    %c0_4 = arith.constant 0 : index
    %4 = vector.load %arg4[%c0_3, %c0_4] : memref<1x64xf32, #tpu.memory_space<vmem>>, vector<1x64xf32>
    %5 = vector.broadcast %4 : vector<1x64xf32> to vector<64x64xf32>
    %6 = arith.addf %3, %5 : vector<64x64xf32>
    %cst_5 = arith.constant 0.000000e+00 : f32
    %7 = vector.broadcast %cst_5 : f32 to vector<64x64xf32>
    %8 = arith.cmpf ogt, %6, %7 : vector<64x64xf32>
    %cst_6 = arith.constant 0.00999999977 : f32
    %9 = vector.broadcast %cst_6 : f32 to vector<64x64xf32>
    %10 = arith.mulf %9, %6 : vector<64x64xf32>
    %11 = arith.select %8, %6, %10 : vector<64x64xi1>, vector<64x64xf32>
    %12 = arith.truncf %11 : vector<64x64xf32> to vector<64x64xbf16>
    %c0_7 = arith.constant 0 : index
    %c0_8 = arith.constant 0 : index
    %13 = vector.load %arg5[%c0_7, %c0_8] : memref<64x128xbf16, #tpu.memory_space<vmem>>, vector<64x128xbf16>
    %cst_9 = arith.constant dense<0.000000e+00> : vector<64x128xf32>
    %14 = tpu.matmul %12, %13, %cst_9 {dimension_numbers = #tpu.dot_dimension_numbers<[1], [0], [0], [1], [0, 0, 1, 1], [], []>} : vector<64x64xbf16>, vector<64x128xbf16>, vector<64x128xf32> -> vector<64x128xf32>
    %c0_10 = arith.constant 0 : index
    %c0_11 = arith.constant 0 : index
    %15 = vector.load %arg6[%c0_10, %c0_11] : memref<1x128xf32, #tpu.memory_space<vmem>>, vector<1x128xf32>
    %16 = vector.broadcast %15 : vector<1x128xf32> to vector<64x128xf32>
    %17 = arith.addf %14, %16 : vector<64x128xf32>
    %cst_12 = arith.constant 0.000000e+00 : f32
    %18 = vector.broadcast %cst_12 : f32 to vector<64x128xf32>
    %19 = arith.cmpf ogt, %17, %18 : vector<64x128xf32>
    %cst_13 = arith.constant 0.00999999977 : f32
    %20 = vector.broadcast %cst_13 : f32 to vector<64x128xf32>
    %21 = arith.mulf %20, %17 : vector<64x128xf32>
    %22 = arith.select %19, %17, %21 : vector<64x128xi1>, vector<64x128xf32>
    %23 = arith.truncf %22 : vector<64x128xf32> to vector<64x128xbf16>
    %c0_14 = arith.constant 0 : index
    %c0_15 = arith.constant 0 : index
    %24 = vector.load %arg7[%c0_14, %c0_15] : memref<128x8xbf16, #tpu.memory_space<vmem>>, vector<128x8xbf16>
    %cst_16 = arith.constant dense<0.000000e+00> : vector<64x8xf32>
    %25 = tpu.matmul %23, %24, %cst_16 {dimension_numbers = #tpu.dot_dimension_numbers<[1], [0], [0], [1], [0, 0, 1, 1], [], []>} : vector<64x128xbf16>, vector<128x8xbf16>, vector<64x8xf32> -> vector<64x8xf32>
    %c0_17 = arith.constant 0 : index
    %c0_18 = arith.constant 0 : index
    %26 = vector.load %arg8[%c0_17, %c0_18] : memref<1x8xf32, #tpu.memory_space<vmem>>, vector<1x8xf32>
    %27 = vector.broadcast %26 : vector<1x8xf32> to vector<64x8xf32>
    %28 = arith.addf %25, %27 : vector<64x8xf32>
    %c64_i32 = arith.constant 64 : i32
    %29 = arith.muli %arg0, %c64_i32 : i32
    %30 = tpu.iota {dimensions = array<i32: 0>} : vector<64x1xi32>
    %31 = vector.broadcast %29 : i32 to vector<64x1xi32>
    %32 = arith.addi %31, %30 : vector<64x1xi32>
    %c64_i32_19 = arith.constant 64 : i32
    %33 = vector.broadcast %c64_i32_19 : i32 to vector<64x1xi32>
    %34 = arith.cmpi slt, %32, %33 : vector<64x1xi32>
    %c0_20 = arith.constant 0 : index
    %c0_21 = arith.constant 0 : index
    %35 = vector.load %arg2[%c0_20, %c0_21] : memref<64x6xf32, #tpu.memory_space<vmem>>, vector<64x6xf32>
    %cst_22 = arith.constant 0.000000e+00 : f32
    %36 = vector.shape_cast %34 : vector<64x1xi1> to vector<64x1xi1>
    %37 = vector.broadcast %36 : vector<64x1xi1> to vector<64x8xi1>
    %38 = vector.broadcast %cst_22 : f32 to vector<64x8xf32>
    %39 = arith.select %37, %28, %38 : vector<64x8xi1>, vector<64x8xf32>
    %40 = vector.extract_strided_slice %28 {offsets = [0, 0], sizes = [64, 6], strides = [1, 1]} : vector<64x8xf32> to vector<64x6xf32>
    %41 = arith.subf %40, %35 : vector<64x6xf32>
    %cst_23 = arith.constant 0.000000e+00 : f32
    %42 = vector.shape_cast %34 : vector<64x1xi1> to vector<64x1xi1>
    %43 = vector.broadcast %42 : vector<64x1xi1> to vector<64x6xi1>
    %44 = vector.broadcast %cst_23 : f32 to vector<64x6xf32>
    %45 = arith.select %43, %41, %44 : vector<64x6xi1>, vector<64x6xf32>
    %cst_24 = arith.constant 0.000000e+00 : f32
    %46 = vector.shape_cast %34 : vector<64x1xi1> to vector<64x1xi1>
    %47 = vector.broadcast %46 : vector<64x1xi1> to vector<64x6xi1>
    %48 = vector.broadcast %cst_24 : f32 to vector<64x6xf32>
    %49 = arith.select %47, %35, %48 : vector<64x6xi1>, vector<64x6xf32>
    %cst_25 = arith.constant dense<0.000000e+00> : vector<8xf32>
    %50 = vector.multi_reduction <add>, %39, %cst_25 [0] : vector<64x8xf32> to vector<8xf32>
    %51 = vector.shape_cast %50 : vector<8xf32> to vector<1x8xf32>
    %52 = arith.mulf %45, %45 : vector<64x6xf32>
    %cst_26 = arith.constant dense<0.000000e+00> : vector<64xf32>
    %53 = vector.multi_reduction <add>, %52, %cst_26 [1] : vector<64x6xf32> to vector<64xf32>
    %54 = vector.shape_cast %53 : vector<64xf32> to vector<64x1xf32>
    %cst_27 = arith.constant dense<0.000000e+00> : vector<1xf32>
    %55 = vector.multi_reduction <add>, %54, %cst_27 [0] : vector<64x1xf32> to vector<1xf32>
    %56 = vector.shape_cast %55 : vector<1xf32> to vector<1x1xf32>
    %cst_28 = arith.constant dense<0.000000e+00> : vector<6xf32>
    %57 = vector.multi_reduction <add>, %49, %cst_28 [0] : vector<64x6xf32> to vector<6xf32>
    %58 = vector.shape_cast %57 : vector<6xf32> to vector<1x6xf32>
    %59 = tpu.iota {dimensions = array<i32: 1>} : vector<1x8xi32>
    %c6_i32 = arith.constant 6 : i32
    %60 = vector.broadcast %c6_i32 : i32 to vector<1x8xi32>
    %61 = arith.cmpi eq, %59, %60 : vector<1x8xi32>
    %cst_29 = arith.constant 0.000000e+00 : f32
    %62 = vector.shape_cast %56 : vector<1x1xf32> to vector<1x1xf32>
    %63 = vector.broadcast %62 : vector<1x1xf32> to vector<1x8xf32>
    %64 = vector.broadcast %cst_29 : f32 to vector<1x8xf32>
    %65 = arith.select %61, %63, %64 : vector<1x8xi1>, vector<1x8xf32>
    %66 = arith.addf %51, %65 : vector<1x8xf32>
    %67 = vector.shape_cast %66 : vector<1x8xf32> to vector<1x8xf32>
    %68 = vector.broadcast %67 : vector<1x8xf32> to vector<8x8xf32>
    %c0_30 = arith.constant 0 : index
    %c0_31 = arith.constant 0 : index
    %69 = vector.load %arg9[%c0_30, %c0_31] : memref<8x8xf32, #tpu.memory_space<vmem>>, vector<8x8xf32>
    tpu.vector_store %arg9[%c0_30, %c0_31], %68 {strides = array<i32>} : memref<8x8xf32, #tpu.memory_space<vmem>>, vector<8x8xf32>,
    %70 = vector.shape_cast %58 : vector<1x6xf32> to vector<1x6xf32>
    %71 = vector.broadcast %70 : vector<1x6xf32> to vector<8x6xf32>
    %c0_32 = arith.constant 0 : index
    %c0_33 = arith.constant 0 : index
    %72 = vector.load %arg10[%c0_32, %c0_33] : memref<8x6xf32, #tpu.memory_space<vmem>>, vector<8x6xf32>
    tpu.vector_store %arg10[%c0_32, %c0_33], %71 {strides = array<i32>} : memref<8x6xf32, #tpu.memory_space<vmem>>, vector<8x6xf32>,
    return
  }
  func.func @transform_0(%arg0: i32) -> (i32, i32) {
    %c0_i32 = arith.constant 0 : i32
    %c0_i32_0 = arith.constant 0 : i32
    return %arg0, %c0_i32 : i32, i32
  }
  func.func @transform_1(%arg0: i32) -> (i32, i32) {
    %c0_i32 = arith.constant 0 : i32
    %c0_i32_0 = arith.constant 0 : i32
    return %arg0, %c0_i32 : i32, i32
  }
  func.func @transform_2(%arg0: i32) -> (i32, i32) {
    %c0_i32 = arith.constant 0 : i32
    %c0_i32_0 = arith.constant 0 : i32
    %c0_i32_1 = arith.constant 0 : i32
    return %c0_i32, %c0_i32_0 : i32, i32
  }
  func.func @transform_3(%arg0: i32) -> (i32, i32) {
    %c0_i32 = arith.constant 0 : i32
    %c0_i32_0 = arith.constant 0 : i32
    %c0_i32_1 = arith.constant 0 : i32
    return %c0_i32, %c0_i32_0 : i32, i32
  }
  func.func @transform_4(%arg0: i32) -> (i32, i32) {
    %c0_i32 = arith.constant 0 : i32
    %c0_i32_0 = arith.constant 0 : i32
    %c0_i32_1 = arith.constant 0 : i32
    return %c0_i32, %c0_i32_0 : i32, i32
  }
  func.func @transform_5(%arg0: i32) -> (i32, i32) {
    %c0_i32 = arith.constant 0 : i32
    %c0_i32_0 = arith.constant 0 : i32
    %c0_i32_1 = arith.constant 0 : i32
    return %c0_i32, %c0_i32_0 : i32, i32
  }
  func.func @transform_6(%arg0: i32) -> (i32, i32) {
    %c0_i32 = arith.constant 0 : i32
    %c0_i32_0 = arith.constant 0 : i32
    %c0_i32_1 = arith.constant 0 : i32
    return %c0_i32, %c0_i32_0 : i32, i32
  }
  func.func @transform_7(%arg0: i32) -> (i32, i32) {
    %c0_i32 = arith.constant 0 : i32
    %c0_i32_0 = arith.constant 0 : i32
    %c0_i32_1 = arith.constant 0 : i32
    return %c0_i32, %c0_i32_0 : i32, i32
  }
  func.func @transform_8(%arg0: i32) -> (i32, i32) {
    %c0_i32 = arith.constant 0 : i32
    %c0_i32_0 = arith.constant 0 : i32
    return %arg0, %c0_i32 : i32, i32
  }
  func.func @transform_9(%arg0: i32) -> (i32, i32) {
    %c0_i32 = arith.constant 0 : i32
    %c0_i32_0 = arith.constant 0 : i32
    return %arg0, %c0_i32 : i32, i32
  }
}

</mosaic_0001>

<llo_original>
// kernel: compensation_net_forward.1
$region0: #{compensation_net_forward.1}
  #allocation0 [shape = 'u32[]', space=smem, size = 0x4, offset = 0x4, fixed_abs, tag = 'smem constant byte address 0x4 - core index']
  #allocation1 [shape = 'u32[144,128]{1,0:T(1,128)}', space=vmem, size = 0x12000, scoped, tag = 'internal scratch']
  %s0 = inlined_call_operand.vmem [shape: f32[64,7], index: 0, kind: input, shape index: {}]
  %s1 = inlined_call_operand.vmem [shape: f32[64,6], index: 1, kind: input, shape index: {}]
  %s2 = inlined_call_operand.vmem [shape: bf16[7,64], index: 2, kind: input, shape index: {}]
  %s3 = inlined_call_operand.vmem [shape: f32[1,64], index: 3, kind: input, shape index: {}]
  %s4 = inlined_call_operand.vmem [shape: bf16[64,128], index: 4, kind: input, shape index: {}]
  %s5 = inlined_call_operand.vmem [shape: f32[1,128], index: 5, kind: input, shape index: {}]
  %s6 = inlined_call_operand.vmem [shape: bf16[128,8], index: 6, kind: input, shape index: {}]
  %s7 = inlined_call_operand.vmem [shape: f32[1,8], index: 7, kind: input, shape index: {}]
  %s8 = inlined_call_operand.vmem [shape: f32[8,8], index: 8, kind: output, shape index: {0}]
  %s9 = inlined_call_operand.vmem [shape: f32[8,6], index: 9, kind: output, shape index: {1}]
  %10 = xla_tuple %s8, %s9
  %s11 = sld [smem:[#allocation0]]
  $region50: #{compensation_net_forward.1} parent=0
    _
  %s13 = ssub.s32 1, %s11
  %s14 = scalar_select 0, %s13, %s11
  // Predicated region
  $region2: #{compensation_net_forward.1} parent=0 // pred_check
    _
  $region3: #{compensation_net_forward.1} parent=0 // pred_check_branch
    %16 = sbr.rel (0) target = $region5
  $region4: #{compensation_net_forward.1} parent=0 // pred_region
    _
  $region5: #{compensation_net_forward.1} parent=0 // pred_fallthru
    _
  // Predicated region
  $region6: #{compensation_net_forward.1} parent=0 // pred_check
    _
  $region7: #{compensation_net_forward.1} parent=0 // pred_check_branch
    %18 = sbr.rel (0) target = $region9
  $region8: #{compensation_net_forward.1} parent=0 // pred_region
    _
  $region9: #{compensation_net_forward.1} parent=0 // pred_fallthru
    _
  // Predicated region
  $region10: #{compensation_net_forward.1} parent=0 // pred_check
    _
  $region11: #{compensation_net_forward.1} parent=0 // pred_check_branch
    %20 = sbr.rel (0) target = $region13
  $region12: #{compensation_net_forward.1} parent=0 // pred_region
    _
  $region13: #{compensation_net_forward.1} parent=0 // pred_fallthru
    _
  // Predicated region
  $region14: #{compensation_net_forward.1} parent=0 // pred_check
    _
  $region15: #{compensation_net_forward.1} parent=0 // pred_check_branch
    %22 = sbr.rel (0) target = $region17
  $region16: #{compensation_net_forward.1} parent=0 // pred_region
    _
  $region17: #{compensation_net_forward.1} parent=0 // pred_fallthru
    _
  // Predicated region
  $region18: #{compensation_net_forward.1} parent=0 // pred_check
    _
  $region19: #{compensation_net_forward.1} parent=0 // pred_check_branch
    %24 = sbr.rel (0) target = $region21
  $region20: #{compensation_net_forward.1} parent=0 // pred_region
    _
  $region21: #{compensation_net_forward.1} parent=0 // pred_fallthru
    _
  // Predicated region
  $region22: #{compensation_net_forward.1} parent=0 // pred_check
    _
  $region23: #{compensation_net_forward.1} parent=0 // pred_check_branch
    %26 = sbr.rel (0) target = $region25
  $region24: #{compensation_net_forward.1} parent=0 // pred_region
    _
  $region25: #{compensation_net_forward.1} parent=0 // pred_fallthru
    _
  // Predicated region
  $region26: #{compensation_net_forward.1} parent=0 // pred_check
    _
  $region27: #{compensation_net_forward.1} parent=0 // pred_check_branch
    %28 = sbr.rel (0) target = $region29
  $region28: #{compensation_net_forward.1} parent=0 // pred_region
    _
  $region29: #{compensation_net_forward.1} parent=0 // pred_fallthru
    _
  // Predicated region
  $region30: #{compensation_net_forward.1} parent=0 // pred_check
    _
  $region31: #{compensation_net_forward.1} parent=0 // pred_check_branch
    %30 = sbr.rel (0) target = $region33
  $region32: #{compensation_net_forward.1} parent=0 // pred_region
    _
  $region33: #{compensation_net_forward.1} parent=0 // pred_fallthru
    _
  %v32 = vld [vmem:[%s0] sm:$0xff]
  %v33 = vld [vmem:[%s0 + $0x8] sm:$0xff]
  %v34 = vld [vmem:[%s0 + $0x10] sm:$0xff]
  %v35 = vld [vmem:[%s0 + $0x18] sm:$0xff]
  %v36 = vld [vmem:[%s0 + $0x20] sm:$0xff]
  %v37 = vld [vmem:[%s0 + $0x28] sm:$0xff]
  %v38 = vld [vmem:[%s0 + $0x30] sm:$0xff]
  %v39 = vld [vmem:[%s0 + $0x38] sm:$0xff]
  %v40 = vpack.c.bf16 %v33, %v32
  %v41 = vpack.c.bf16 %v35, %v34
  %v42 = vpack.c.bf16 %v37, %v36
  %v43 = vpack.c.bf16 %v39, %v38
  %v44 = vld [vmem:[%s2] sm:$0xf]
  %v45 = vld [vmem:[%s3] sm:$0x1]
  %v47 = vlaneseq
  %v48 = vshrl.u32 %v47, 7
  %v49 = vsub.s32 0, %v48
  %v50 = vrot.slane %v45, %v49
  %vm52 = vcmask 56320
  %v54 = vsel %vm52, %v40, 0
  %v57 = vsel %vm52, %v41, 0
  %v60 = vsel %vm52, %v42, 0
  %v63 = vsel %vm52, %v43, 0
  %vm65 = vcmask 1042432
  %vm66 = vcmask 1043456
  %v67 = vsel %vm65, 4294967295, 65535
  %v68 = vsel %vm66, %v67, 0
  %v70 = vand.u32 %v44, %v68
  %72 = vmatprep.subr.bf16.mxu0 0
  %73 = vmatpush1.bf16.msra.mxu0 %v70
  %74 = vmatprep.subr.bf16.mxu0 0
  %75 = vmatpush1.bf16.msra.mxu0 0
  %76 = vmatprep.subr.bf16.mxu0 0
  %77 = vmatpush1.bf16.msra.mxu0 0
  %78 = vmatprep.subr.bf16.mxu0 0
  %79 = vmatpush1.bf16.msra.mxu0 0
  %80 = vmatprep.subr.bf16.mxu0 0
  %81 = vmatpush1.bf16.msra.mxu0 0
  %82 = vmatprep.subr.bf16.mxu0 0
  %83 = vmatpush1.bf16.msra.mxu0 0
  %84 = vmatprep.subr.bf16.mxu0 0
  %85 = vmatpush1.bf16.msra.mxu0 0
  %86 = vmatprep.subr.bf16.mxu0 0
  %87 = vmatpush1.bf16.msra.mxu0 0
  %88 = vmatprep.subr.bf16.mxu0 0
  %89 = vmatpush1.bf16.msra.mxu0 0
  %90 = vmatprep.subr.bf16.mxu0 0
  %91 = vmatpush1.bf16.msra.mxu0 0
  %92 = vmatprep.subr.bf16.mxu0 0
  %93 = vmatpush1.bf16.msra.mxu0 0
  %94 = vmatprep.subr.bf16.mxu0 0
  %95 = vmatpush1.bf16.msra.mxu0 0
  %96 = vmatprep.subr.bf16.mxu0 0
  %97 = vmatpush1.bf16.msra.mxu0 0
  %98 = vmatprep.subr.bf16.mxu0 0
  %99 = vmatpush1.bf16.msra.mxu0 0
  %100 = vmatprep.subr.bf16.mxu0 0
  %101 = vmatpush1.bf16.msra.mxu0 0
  %102 = vmatprep.subr.bf16.mxu0 0
  %103 = vmatpush1.bf16.msra.mxu0 0
  %104 = vmatprep.mubr.bf16.mxu0 0
  %105 = vmatmul.mubr.bf16.gmra.mrb[0].mxu0 %v54
  %v106 = vpop.f32.mrb[0].mxu0
  %v107 = vadd.f32 %v50, %v106
  %v108 = vpop.f32.mrb[0].mxu0
  %v109 = vpop.f32.mrb[0].mxu0
  %v110 = vadd.f32 %v50, %v109
  %v111 = vpop.f32.mrb[0].mxu0
  %112 = vmatprep.mubr.bf16.mxu0 0
  %113 = vmatmul.mubr.bf16.gmra.mrb[0].mxu0 %v57
  %v114 = vpop.f32.mrb[0].mxu0
  %v115 = vadd.f32 %v50, %v114
  %v116 = vpop.f32.mrb[0].mxu0
  %v117 = vpop.f32.mrb[0].mxu0
  %v118 = vadd.f32 %v50, %v117
  %v119 = vpop.f32.mrb[0].mxu0
  %120 = vmatprep.mubr.bf16.mxu0 0
  %121 = vmatmul.mubr.bf16.gmra.mrb[0].mxu0 %v60
  %v122 = vpop.f32.mrb[0].mxu0
  %v123 = vadd.f32 %v50, %v122
  %v124 = vpop.f32.mrb[0].mxu0
  %v125 = vpop.f32.mrb[0].mxu0
  %v126 = vadd.f32 %v50, %v125
  %v127 = vpop.f32.mrb[0].mxu0
  %128 = vmatprep.mubr.bf16.mxu0 0
  %129 = vmatmul.mubr.bf16.gmra.mrb[0].mxu0 %v63
  %v130 = vpop.f32.mrb[0].mxu0
  %v131 = vadd.f32 %v50, %v130
  %v132 = vpop.f32.mrb[0].mxu0
  %v133 = vpop.f32.mrb[0].mxu0
  %v134 = vadd.f32 %v50, %v133
  %v135 = vpop.f32.mrb[0].mxu0
  %136 = vdwg.mxu0
  %vm137 = vcmp.gt.f32.partialorder %v107, 0.0
  %vm138 = vcmp.gt.f32.partialorder %v110, 0.0
  %vm139 = vcmp.gt.f32.partialorder %v115, 0.0
  %vm140 = vcmp.gt.f32.partialorder %v118, 0.0
  %vm141 = vcmp.gt.f32.partialorder %v123, 0.0
  %vm142 = vcmp.gt.f32.partialorder %v126, 0.0
  %vm143 = vcmp.gt.f32.partialorder %v131, 0.0
  %vm144 = vcmp.gt.f32.partialorder %v134, 0.0
  %v145 = vmul.f32 %v107, 0.01
  %v146 = vmul.f32 %v110, 0.01
  %v147 = vmul.f32 %v115, 0.01
  %v148 = vmul.f32 %v118, 0.01
  %v149 = vmul.f32 %v123, 0.01
  %v150 = vmul.f32 %v126, 0.01
  %v151 = vmul.f32 %v131, 0.01
  %v152 = vmul.f32 %v134, 0.01
  %v153 = vsel %vm137, %v107, %v145
  %v154 = vsel %vm138, %v110, %v146
  %v155 = vsel %vm139, %v115, %v147
  %v156 = vsel %vm140, %v118, %v148
  %v157 = vsel %vm141, %v123, %v149
  %v158 = vsel %vm142, %v126, %v150
  %v159 = vsel %vm143, %v131, %v151
  %v160 = vsel %vm144, %v134, %v152
  %v161 = vpack.c.bf16 %v154, %v153
  %v162 = vpack.c.bf16 %v156, %v155
  %v163 = vpack.c.bf16 %v158, %v157
  %v164 = vpack.c.bf16 %v160, %v159
  %v165 = vld [vmem:[%s4] sm:$0xf]
  %v166 = vld [vmem:[%s4 + $0x4] sm:$0xf]
  %v167 = vld [vmem:[%s4 + $0x8] sm:$0xf]
  %v168 = vld [vmem:[%s4 + $0xc] sm:$0xf]
  %v169 = vld [vmem:[%s4 + $0x10] sm:$0xf]
  %v170 = vld [vmem:[%s4 + $0x14] sm:$0xf]
  %v171 = vld [vmem:[%s4 + $0x18] sm:$0xf]
  %v172 = vld [vmem:[%s4 + $0x1c] sm:$0xf]
  %v173 = vld [vmem:[%s5] sm:$0x1]
  %v175 = vlaneseq
  %v176 = vshrl.u32 %v175, 7
  %v177 = vsub.s32 0, %v176
  %v178 = vrot.slane %v173, %v177
  %v188 = vunpack.c.l.b16 %v165
  %v189 = vunpack.c.l.b16 %v166
  %v190 = vunpack.c.l.b16 %v167
  %v191 = vunpack.c.l.b16 %v168
  %v192 = vunpack.c.l.b16 %v169
  %v193 = vunpack.c.l.b16 %v170
  %v194 = vunpack.c.l.b16 %v171
  %v195 = vunpack.c.l.b16 %v172
  %v196 = vpack.c.b16 %v189, %v188
  %v197 = vpack.c.b16 %v191, %v190
  %v198 = vpack.c.b16 %v193, %v192
  %v199 = vpack.c.b16 %v195, %v194
  %vm204 = vcmask 523264
  %v206 = vsel %vm204, %v161, 0
  %v209 = vsel %vm204, %v162, 0
  %v212 = vsel %vm204, %v163, 0
  %v215 = vsel %vm204, %v164, 0
  %217 = vmatprep.subr.bf16.mxu0 0
  %218 = vmatpush1.bf16.msra.mxu0 %v196
  %219 = vmatprep.subr.bf16.mxu0 0
  %220 = vmatpush1.bf16.msra.mxu0 %v197
  %221 = vmatprep.subr.bf16.mxu0 0
  %222 = vmatpush1.bf16.msra.mxu0 %v198
  %223 = vmatprep.subr.bf16.mxu0 0
  %224 = vmatpush1.bf16.msra.mxu0 %v199
  %225 = vmatprep.subr.bf16.mxu0 0
  %226 = vmatpush1.bf16.msra.mxu0 0
  %227 = vmatprep.subr.bf16.mxu0 0
  %228 = vmatpush1.bf16.msra.mxu0 0
  %229 = vmatprep.subr.bf16.mxu0 0
  %230 = vmatpush1.bf16.msra.mxu0 0
  %231 = vmatprep.subr.bf16.mxu0 0
  %232 = vmatpush1.bf16.msra.mxu0 0
  %233 = vmatprep.subr.bf16.mxu0 0
  %234 = vmatpush1.bf16.msra.mxu0 0
  %235 = vmatprep.subr.bf16.mxu0 0
  %236 = vmatpush1.bf16.msra.mxu0 0
  %237 = vmatprep.subr.bf16.mxu0 0
  %238 = vmatpush1.bf16.msra.mxu0 0
  %239 = vmatprep.subr.bf16.mxu0 0
  %240 = vmatpush1.bf16.msra.mxu0 0
  %241 = vmatprep.subr.bf16.mxu0 0
  %242 = vmatpush1.bf16.msra.mxu0 0
  %243 = vmatprep.subr.bf16.mxu0 0
  %244 = vmatpush1.bf16.msra.mxu0 0
  %245 = vmatprep.subr.bf16.mxu0 0
  %246 = vmatpush1.bf16.msra.mxu0 0
  %247 = vmatprep.subr.bf16.mxu0 0
  %248 = vmatpush1.bf16.msra.mxu0 0
  %249 = vmatprep.mubr.bf16.mxu0 0
  %250 = vmatmul.mubr.bf16.gmra.mrb[0].mxu0 %v206
  %v251 = vpop.f32.mrb[0].mxu0
  %v252 = vadd.f32 %v178, %v251
  %v253 = vpop.f32.mrb[0].mxu0
  %v254 = vpop.f32.mrb[0].mxu0
  %v255 = vadd.f32 %v178, %v254
  %v256 = vpop.f32.mrb[0].mxu0
  %257 = vmatprep.mubr.bf16.mxu0 0
  %258 = vmatmul.mubr.bf16.gmra.mrb[0].mxu0 %v209
  %v259 = vpop.f32.mrb[0].mxu0
  %v260 = vadd.f32 %v178, %v259
  %v261 = vpop.f32.mrb[0].mxu0
  %v262 = vpop.f32.mrb[0].mxu0
  %v263 = vadd.f32 %v178, %v262
  %v264 = vpop.f32.mrb[0].mxu0
  %265 = vmatprep.mubr.bf16.mxu0 0
  %266 = vmatmul.mubr.bf16.gmra.mrb[0].mxu0 %v212
  %v267 = vpop.f32.mrb[0].mxu0
  %v268 = vadd.f32 %v178, %v267
  %v269 = vpop.f32.mrb[0].mxu0
  %v270 = vpop.f32.mrb[0].mxu0
  %v271 = vadd.f32 %v178, %v270
  %v272 = vpop.f32.mrb[0].mxu0
  %273 = vmatprep.mubr.bf16.mxu0 0
  %274 = vmatmul.mubr.bf16.gmra.mrb[0].mxu0 %v215
  %v275 = vpop.f32.mrb[0].mxu0
  %v276 = vadd.f32 %v178, %v275
  %v277 = vpop.f32.mrb[0].mxu0
  %v278 = vpop.f32.mrb[0].mxu0
  %v279 = vadd.f32 %v178, %v278
  %v280 = vpop.f32.mrb[0].mxu0
  %281 = vdwg.mxu0
  %vm282 = vcmp.gt.f32.partialorder %v252, 0.0
  %vm283 = vcmp.gt.f32.partialorder %v255, 0.0
  %vm284 = vcmp.gt.f32.partialorder %v260, 0.0
  %vm285 = vcmp.gt.f32.partialorder %v263, 0.0
  %vm286 = vcmp.gt.f32.partialorder %v268, 0.0
  %vm287 = vcmp.gt.f32.partialorder %v271, 0.0
  %vm288 = vcmp.gt.f32.partialorder %v276, 0.0
  %vm289 = vcmp.gt.f32.partialorder %v279, 0.0
  %v290 = vmul.f32 %v252, 0.01
  %v291 = vmul.f32 %v255, 0.01
  %v292 = vmul.f32 %v260, 0.01
  %v293 = vmul.f32 %v263, 0.01
  %v294 = vmul.f32 %v268, 0.01
  %v295 = vmul.f32 %v271, 0.01
  %v296 = vmul.f32 %v276, 0.01
  %v297 = vmul.f32 %v279, 0.01
  %v298 = vsel %vm282, %v252, %v290
  %v299 = vsel %vm283, %v255, %v291
  %v300 = vsel %vm284, %v260, %v292
  %v301 = vsel %vm285, %v263, %v293
  %v302 = vsel %vm286, %v268, %v294
  %v303 = vsel %vm287, %v271, %v295
  %v304 = vsel %vm288, %v276, %v296
  %v305 = vsel %vm289, %v279, %v297
  %v306 = vpack.c.bf16 %v299, %v298
  %v307 = vpack.c.bf16 %v301, %v300
  %v308 = vpack.c.bf16 %v303, %v302
  %v309 = vpack.c.bf16 %v305, %v304
  %v310 = vld [vmem:[%s6] sm:$0xf]
  %v311 = vld [vmem:[%s6 + $0x4] sm:$0xf]
  %v312 = vld [vmem:[%s6 + $0x8] sm:$0xf]
  %v313 = vld [vmem:[%s6 + $0xc] sm:$0xf]
  %v314 = vld [vmem:[%s6 + $0x10] sm:$0xf]
  %v315 = vld [vmem:[%s6 + $0x14] sm:$0xf]
  %v316 = vld [vmem:[%s6 + $0x18] sm:$0xf]
  %v317 = vld [vmem:[%s6 + $0x1c] sm:$0xf]
  %v318 = vld [vmem:[%s6 + $0x20] sm:$0xf]
  %v319 = vld [vmem:[%s6 + $0x24] sm:$0xf]
  %v320 = vld [vmem:[%s6 + $0x28] sm:$0xf]
  %v321 = vld [vmem:[%s6 + $0x2c] sm:$0xf]
  %v322 = vld [vmem:[%s6 + $0x30] sm:$0xf]
  %v323 = vld [vmem:[%s6 + $0x34] sm:$0xf]
  %v324 = vld [vmem:[%s6 + $0x38] sm:$0xf]
  %v325 = vld [vmem:[%s6 + $0x3c] sm:$0xf]
  %v326 = vld [vmem:[%s7] sm:$0x1]
  %v328 = vlaneseq
  %v329 = vshrl.u32 %v328, 7
  %v330 = vsub.s32 0, %v329
  %v331 = vrot.slane %v326, %v330
  %v349 = vunpack.c.l.b16 %v310
  %v350 = vunpack.c.l.b16 %v311
  %v351 = vunpack.c.l.b16 %v312
  %v352 = vunpack.c.l.b16 %v313
  %v353 = vunpack.c.l.b16 %v314
  %v354 = vunpack.c.l.b16 %v315
  %v355 = vunpack.c.l.b16 %v316
  %v356 = vunpack.c.l.b16 %v317
  %v357 = vunpack.c.l.b16 %v318
  %v358 = vunpack.c.l.b16 %v319
  %v359 = vunpack.c.l.b16 %v320
  %v360 = vunpack.c.l.b16 %v321
  %v361 = vunpack.c.l.b16 %v322
  %v362 = vunpack.c.l.b16 %v323
  %v363 = vunpack.c.l.b16 %v324
  %v364 = vunpack.c.l.b16 %v325
  %v365 = vpack.c.b16 %v350, %v349
  %v366 = vpack.c.b16 %v352, %v351
  %v367 = vpack.c.b16 %v354, %v353
  %v368 = vpack.c.b16 %v356, %v355
  %v369 = vpack.c.b16 %v358, %v357
  %v370 = vpack.c.b16 %v360, %v359
  %v371 = vpack.c.b16 %v362, %v361
  %v372 = vpack.c.b16 %v364, %v363
  %381 = vmatprep.subr.bf16.mxu0 0
  %382 = vmatpush1.bf16.msra.mxu0 %v365
  %383 = vmatprep.subr.bf16.mxu0 0
  %384 = vmatpush1.bf16.msra.mxu0 %v366
  %385 = vmatprep.subr.bf16.mxu0 0
  %386 = vmatpush1.bf16.msra.mxu0 %v367
  %387 = vmatprep.subr.bf16.mxu0 0
  %388 = vmatpush1.bf16.msra.mxu0 %v368
  %389 = vmatprep.subr.bf16.mxu0 0
  %390 = vmatpush1.bf16.msra.mxu0 %v369
  %391 = vmatprep.subr.bf16.mxu0 0
  %392 = vmatpush1.bf16.msra.mxu0 %v370
  %393 = vmatprep.subr.bf16.mxu0 0
  %394 = vmatpush1.bf16.msra.mxu0 %v371
  %395 = vmatprep.subr.bf16.mxu0 0
  %396 = vmatpush1.bf16.msra.mxu0 %v372
  %397 = vmatprep.subr.bf16.mxu0 0
  %398 = vmatpush1.bf16.msra.mxu0 0
  %399 = vmatprep.subr.bf16.mxu0 0
  %400 = vmatpush1.bf16.msra.mxu0 0
  %401 = vmatprep.subr.bf16.mxu0 0
  %402 = vmatpush1.bf16.msra.mxu0 0
  %403 = vmatprep.subr.bf16.mxu0 0
  %404 = vmatpush1.bf16.msra.mxu0 0
  %405 = vmatprep.subr.bf16.mxu0 0
  %406 = vmatpush1.bf16.msra.mxu0 0
  %407 = vmatprep.subr.bf16.mxu0 0
  %408 = vmatpush1.bf16.msra.mxu0 0
  %409 = vmatprep.subr.bf16.mxu0 0
  %410 = vmatpush1.bf16.msra.mxu0 0
  %411 = vmatprep.subr.bf16.mxu0 0
  %412 = vmatpush1.bf16.msra.mxu0 0
  %413 = vmatprep.mubr.bf16.mxu0 0
  %414 = vmatmul.mubr.bf16.gmra.mrb[0].mxu0 %v306
  %v415 = vpop.f32.mrb[0].mxu0
  %v416 = vadd.f32 %v331, %v415
  %v417 = vpop.f32.mrb[0].mxu0
  %v418 = vpop.f32.mrb[0].mxu0
  %v419 = vadd.f32 %v331, %v418
  %v420 = vpop.f32.mrb[0].mxu0
  %421 = vmatprep.mubr.bf16.mxu0 0
  %422 = vmatmul.mubr.bf16.gmra.mrb[0].mxu0 %v307
  %v423 = vpop.f32.mrb[0].mxu0
  %v424 = vadd.f32 %v331, %v423
  %v425 = vpop.f32.mrb[0].mxu0
  %v426 = vpop.f32.mrb[0].mxu0
  %v427 = vadd.f32 %v331, %v426
  %v428 = vpop.f32.mrb[0].mxu0
  %429 = vmatprep.mubr.bf16.mxu0 0
  %430 = vmatmul.mubr.bf16.gmra.mrb[0].mxu0 %v308
  %v431 = vpop.f32.mrb[0].mxu0
  %v432 = vadd.f32 %v331, %v431
  %v433 = vpop.f32.mrb[0].mxu0
  %v434 = vpop.f32.mrb[0].mxu0
  %v435 = vadd.f32 %v331, %v434
  %v436 = vpop.f32.mrb[0].mxu0
  %437 = vmatprep.mubr.bf16.mxu0 0
  %438 = vmatmul.mubr.bf16.gmra.mrb[0].mxu0 %v309
  %v439 = vpop.f32.mrb[0].mxu0
  %v440 = vadd.f32 %v331, %v439
  %v441 = vpop.f32.mrb[0].mxu0
  %v442 = vpop.f32.mrb[0].mxu0
  %v443 = vadd.f32 %v331, %v442
  %v444 = vpop.f32.mrb[0].mxu0
  %445 = vdwg.mxu0
  %s446 = smul.u32 0, 64
  %v447 = vlaneseq
  %v448 = vshrl.u32 %v447, 7
  %v449 = vadd.s32 %v448, 8
  %v450 = vadd.s32 %v448, 16
  %v451 = vadd.s32 %v448, 24
  %v452 = vadd.s32 %v448, 32
  %v453 = vadd.s32 %v448, 40
  %v454 = vadd.s32 %v448, 48
  %v455 = vadd.s32 %v448, 56
  %v456 = vstv %s446
  %v457 = vadd.s32 %v456, %v448
  %v458 = vadd.s32 %v456, %v449
  %v459 = vadd.s32 %v456, %v450
  %v460 = vadd.s32 %v456, %v451
  %v461 = vadd.s32 %v456, %v452
  %v462 = vadd.s32 %v456, %v453
  %v463 = vadd.s32 %v456, %v454
  %v464 = vadd.s32 %v456, %v455
  %vm465 = vcmp.lt.s32.totalorder %v457, 64
  %vm466 = vcmp.lt.s32.totalorder %v458, 64
  %vm467 = vcmp.lt.s32.totalorder %v459, 64
  %vm468 = vcmp.lt.s32.totalorder %v460, 64
  %vm469 = vcmp.lt.s32.totalorder %v461, 64
  %vm470 = vcmp.lt.s32.totalorder %v462, 64
  %vm471 = vcmp.lt.s32.totalorder %v463, 64
  %vm472 = vcmp.lt.s32.totalorder %v464, 64
  %v473 = vld [vmem:[%s1] sm:$0xff]
  %v474 = vld [vmem:[%s1 + $0x8] sm:$0xff]
  %v475 = vld [vmem:[%s1 + $0x10] sm:$0xff]
  %v476 = vld [vmem:[%s1 + $0x18] sm:$0xff]
  %v477 = vld [vmem:[%s1 + $0x20] sm:$0xff]
  %v478 = vld [vmem:[%s1 + $0x28] sm:$0xff]
  %v479 = vld [vmem:[%s1 + $0x30] sm:$0xff]
  %v480 = vld [vmem:[%s1 + $0x38] sm:$0xff]
  %v481 = vsel %vm465, 1, 0
  %v482 = vsel %vm466, 1, 0
  %v483 = vsel %vm467, 1, 0
  %v484 = vsel %vm468, 1, 0
  %v485 = vsel %vm469, 1, 0
  %v486 = vsel %vm470, 1, 0
  %v487 = vsel %vm471, 1, 0
  %v488 = vsel %vm472, 1, 0
  %vm489 = vcmp.eq.s32.totalorder %v481, 1
  %vm490 = vcmp.eq.s32.totalorder %v482, 1
  %vm491 = vcmp.eq.s32.totalorder %v483, 1
  %vm492 = vcmp.eq.s32.totalorder %v484, 1
  %vm493 = vcmp.eq.s32.totalorder %v485, 1
  %vm494 = vcmp.eq.s32.totalorder %v486, 1
  %vm495 = vcmp.eq.s32.totalorder %v487, 1
  %vm496 = vcmp.eq.s32.totalorder %v488, 1
  %v497 = vsel %vm489, %v416, 0.0
  %v498 = vsel %vm490, %v419, 0.0
  %v499 = vsel %vm491, %v424, 0.0
  %v500 = vsel %vm492, %v427, 0.0
  %v501 = vsel %vm493, %v432, 0.0
  %v502 = vsel %vm494, %v435, 0.0
  %v503 = vsel %vm495, %v440, 0.0
  %v504 = vsel %vm496, %v443, 0.0
  %v505 = vsub.f32 %v416, %v473
  %v506 = vsub.f32 %v419, %v474
  %v507 = vsub.f32 %v424, %v475
  %v508 = vsub.f32 %v427, %v476
  %v509 = vsub.f32 %v432, %v477
  %v510 = vsub.f32 %v435, %v478
  %v511 = vsub.f32 %v440, %v479
  %v512 = vsub.f32 %v443, %v480
  %v513 = vsel %vm489, %v505, 0.0
  %v514 = vsel %vm490, %v506, 0.0
  %v515 = vsel %vm491, %v507, 0.0
  %v516 = vsel %vm492, %v508, 0.0
  %v517 = vsel %vm493, %v509, 0.0
  %v518 = vsel %vm494, %v510, 0.0
  %v519 = vsel %vm495, %v511, 0.0
  %v520 = vsel %vm496, %v512, 0.0
  %v521 = vsel %vm489, %v473, 0.0
  %v522 = vsel %vm490, %v474, 0.0
  %v523 = vsel %vm491, %v475, 0.0
  %v524 = vsel %vm492, %v476, 0.0
  %v525 = vsel %vm493, %v477, 0.0
  %v526 = vsel %vm494, %v478, 0.0
  %v527 = vsel %vm495, %v479, 0.0
  %v528 = vsel %vm496, %v480, 0.0
  %vm529 = vcmask 64512
  %v530 = vsel %vm529, %v497, 0.0
  %v531 = vsel %vm529, %v498, 0.0
  %v532 = vadd.f32 %v530, %v531
  %v533 = vsel %vm529, %v499, 0.0
  %v534 = vadd.f32 %v532, %v533
  %v535 = vsel %vm529, %v500, 0.0
  %v536 = vadd.f32 %v534, %v535
  %v537 = vsel %vm529, %v501, 0.0
  %v538 = vadd.f32 %v536, %v537
  %v539 = vsel %vm529, %v502, 0.0
  %v540 = vadd.f32 %v538, %v539
  %v541 = vsel %vm529, %v503, 0.0
  %v542 = vadd.f32 %v540, %v541
  %v543 = vsel %vm529, %v504, 0.0
  %v544 = vadd.f32 %v542, %v543
  %v545 = vrot.slane %v544, 4
  %v546 = vadd.f32 %v544, %v545
  %v547 = vrot.slane %v546, 2
  %v548 = vadd.f32 %v546, %v547
  %v549 = vrot.slane %v548, 1
  %v550 = vadd.f32 %v548, %v549
  %v551 = vmul.f32 %v513, %v513
  %v552 = vmul.f32 %v514, %v514
  %v553 = vmul.f32 %v515, %v515
  %v554 = vmul.f32 %v516, %v516
  %v555 = vmul.f32 %v517, %v517
  %v556 = vmul.f32 %v518, %v518
  %v557 = vmul.f32 %v519, %v519
  %v558 = vmul.f32 %v520, %v520
  %vm559 = vcmask 48128
  %v560 = vsel %vm559, %v551, 0.0
  %561 = vadd.xlane.f32.xlu0 %v560
  %v562 = vpop.xlane.xlu0 %561
  %v563 = vsel %vm559, %v552, 0.0
  %564 = vadd.xlane.f32.xlu0 %v563
  %v565 = vpop.xlane.xlu0 %564
  %v566 = vsel %vm559, %v553, 0.0
  %567 = vadd.xlane.f32.xlu0 %v566
  %v568 = vpop.xlane.xlu0 %567
  %v569 = vsel %vm559, %v554, 0.0
  %570 = vadd.xlane.f32.xlu0 %v569
  %v571 = vpop.xlane.xlu0 %570
  %v572 = vsel %vm559, %v555, 0.0
  %573 = vadd.xlane.f32.xlu0 %v572
  %v574 = vpop.xlane.xlu0 %573
  %v575 = vsel %vm559, %v556, 0.0
  %576 = vadd.xlane.f32.xlu0 %v575
  %v577 = vpop.xlane.xlu0 %576
  %v578 = vsel %vm559, %v557, 0.0
  %579 = vadd.xlane.f32.xlu0 %v578
  %v580 = vpop.xlane.xlu0 %579
  %v581 = vsel %vm559, %v558, 0.0
  %582 = vadd.xlane.f32.xlu0 %v581
  %v583 = vpop.xlane.xlu0 %582
  %v584 = vadd.f32 %v562, %v565
  %v585 = vadd.f32 %v584, %v568
  %v586 = vadd.f32 %v585, %v571
  %v587 = vadd.f32 %v586, %v574
  %v588 = vadd.f32 %v587, %v577
  %v589 = vadd.f32 %v588, %v580
  %v590 = vadd.f32 %v589, %v583
  %v591 = vrot.slane %v590, 4
  %v592 = vadd.f32 %v590, %v591
  %v593 = vrot.slane %v592, 2
  %v594 = vadd.f32 %v592, %v593
  %v595 = vrot.slane %v594, 1
  %v596 = vadd.f32 %v594, %v595
  %v597 = vsel %vm559, %v521, 0.0
  %v598 = vsel %vm559, %v522, 0.0
  %v599 = vadd.f32 %v597, %v598
  %v600 = vsel %vm559, %v523, 0.0
  %v601 = vadd.f32 %v599, %v600
  %v602 = vsel %vm559, %v524, 0.0
  %v603 = vadd.f32 %v601, %v602
  %v604 = vsel %vm559, %v525, 0.0
  %v605 = vadd.f32 %v603, %v604
  %v606 = vsel %vm559, %v526, 0.0
  %v607 = vadd.f32 %v605, %v606
  %v608 = vsel %vm559, %v527, 0.0
  %v609 = vadd.f32 %v607, %v608
  %v610 = vsel %vm559, %v528, 0.0
  %v611 = vadd.f32 %v609, %v610
  %v612 = vrot.slane %v611, 4
  %v613 = vadd.f32 %v611, %v612
  %v614 = vrot.slane %v613, 2
  %v615 = vadd.f32 %v613, %v614
  %v616 = vrot.slane %v615, 1
  %v617 = vadd.f32 %v615, %v616
  %v618 = vlaneseq
  %v619 = vand.u32 %v618, 127
  %vm620 = vcmp.eq.s32.totalorder %v619, 6
  %v621 = vsel %vm620, %v596, 0.0
  %v622 = vadd.f32 %v550, %v621
  %623 = vst.msk [vmem:[%s8] sm:$0xff] %vm529, %v622
  %624 = vst.msk [vmem:[%s9] sm:$0xff] %vm559, %v617
  // Predicated region
  $region34: #{compensation_net_forward.1} parent=0 // pred_check
    _
  $region35: #{compensation_net_forward.1} parent=0 // pred_check_branch
    %626 = sbr.rel (0) target = $region37
  $region36: #{compensation_net_forward.1} parent=0 // pred_region
    _
  $region37: #{compensation_net_forward.1} parent=0 // pred_fallthru
    _
  // Predicated region
  $region38: #{compensation_net_forward.1} parent=0 // pred_check
    _
  $region39: #{compensation_net_forward.1} parent=0 // pred_check_branch
    %628 = sbr.rel (0) target = $region41
  $region40: #{compensation_net_forward.1} parent=0 // pred_region
    _
  $region41: #{compensation_net_forward.1} parent=0 // pred_fallthru
    _
  // Predicated region
  $region42: #{compensation_net_forward.1} parent=0 // pred_check
    _
  $region43: #{compensation_net_forward.1} parent=0 // pred_check_branch
    %630 = sbr.rel (0) target = $region45
  $region44: #{compensation_net_forward.1} parent=0 // pred_region
    _
  $region45: #{compensation_net_forward.1} parent=0 // pred_fallthru
    _
  // Predicated region
  $region46: #{compensation_net_forward.1} parent=0 // pred_check
    _
  $region47: #{compensation_net_forward.1} parent=0 // pred_check_branch
    %632 = sbr.rel (0) target = $region49
  $region48: #{compensation_net_forward.1} parent=0 // pred_region
    _
  $region49: #{compensation_net_forward.1} parent=0 // pred_fallthru
    _

</llo_original>
